<compile_context>
chip_gen: v5e
topology: v5e:2x2
jax: 0.10.0
libtpu: 0.0.40
codegen_flags: <defaults>
</compile_context>

<pallas_src>
import jax
import jax.numpy as jnp
from jax.experimental import pallas as pl
from jax.experimental.pallas import tpu as pltpu


def _encoder_kernel(x_ref, w1_ref, b1_ref, wh_ref, bh_ref, out_ref):
    # fc1: bf16 MXU matmul with f32 accumulation, bias + ReLU in f32 (VPU)
    h = jnp.dot(x_ref[...], w1_ref[...], preferred_element_type=jnp.float32)
    h = jnp.maximum(h + b1_ref[...], 0.0)

    # fused [mu | logsigma] head: one wide, lane-dense matmul + single store
    out = jnp.dot(h.astype(wh_ref.dtype), wh_ref[...],
                  preferred_element_type=jnp.float32)
    out_ref[...] = (out + bh_ref[...]).astype(out_ref.dtype)


def _round_up(x, m):
    return ((x + m - 1) // m) * m


def encoder_forward(x, params, *, batch_tile=512):
    """x: (B, input_dim) float32.  params: dict (see init_encoder_params).

    Returns (mu, logsigma), each (B, latent_dim) float32.
    """
    B, D = x.shape
    H = params["w1"].shape[1]
    L = params["wmu"].shape[1]

    # ---- fuse the two heads and pad the output to a lane-dense width -------
    n_out = 2 * L
    n_pad = _round_up(max(n_out, 128), 128)
    wh = jnp.concatenate([params["wmu"], params["wsigma"]], axis=1)
    wh = jnp.pad(wh, ((0, 0), (0, n_pad - n_out)))
    bh = jnp.concatenate([params["bmu"], params["bsigma"]], axis=1)
    bh = jnp.pad(bh, ((0, 0), (0, n_pad - n_out)))

    # ---- bf16 for the streamed input + matmul weights, f32 biases ----------
    xb = x.astype(jnp.bfloat16)
    w1 = params["w1"].astype(jnp.bfloat16)
    b1 = params["b1"].astype(jnp.float32)
    wh = wh.astype(jnp.bfloat16)
    bh = bh.astype(jnp.float32)

    # ---- batch tiling: sublane-aligned tile, pad ragged batch in wrapper ---
    tb = min(batch_tile, _round_up(B, 16))
    b_pad = _round_up(B, tb)
    if b_pad != B:
        xb = jnp.pad(xb, ((0, b_pad - B), (0, 0)))
    grid = (b_pad // tb,)

    flops = 2 * b_pad * (D * H + H * n_pad)
    bytes_accessed = (b_pad * D * 2            # x (bf16)
                      + (D * H + H * n_pad) * 2  # weights (bf16)
                      + (H + n_pad) * 4          # biases (f32)
                      + b_pad * n_pad * 4)       # fused output (f32)

    # Double-buffered x/out blocks + resident weights + headroom; stays far
    # below v7x's 64 MiB physical VMEM for tb<=512.
    vmem_limit = int(
        2 * (tb * D * 2 + tb * n_pad * 4)
        + (D * H + H * n_pad) * 2 + (H + n_pad) * 4
        + (8 << 20))

    out = pl.pallas_call(
        _encoder_kernel,
        out_shape=jax.ShapeDtypeStruct((b_pad, n_pad), jnp.float32),
        grid=grid,
        in_specs=[
            pl.BlockSpec((tb, D), lambda i: (i, 0)),      # x: streamed over batch
            pl.BlockSpec((D, H), lambda i: (0, 0)),       # fc1 weight (resident)
            pl.BlockSpec((1, H), lambda i: (0, 0)),       # fc1 bias
            pl.BlockSpec((H, n_pad), lambda i: (0, 0)),   # fused head weight
            pl.BlockSpec((1, n_pad), lambda i: (0, 0)),   # fused head bias
        ],
        out_specs=pl.BlockSpec((tb, n_pad), lambda i: (i, 0)),
        compiler_params=pltpu.CompilerParams(
            dimension_semantics=("parallel",),
            vmem_limit_bytes=vmem_limit,
        ),
        cost_estimate=pl.CostEstimate(
            flops=flops, transcendentals=0, bytes_accessed=bytes_accessed),
    )(xb, w1, b1, wh, bh)

    mu = out[:B, :L]
    logsigma = out[:B, L:n_out]
    return mu, logsigma


def init_encoder_params(key, input_dim, hidden_dim, latent_dim):
    """Deterministic synthetic init (PyTorch-Linear-style uniform bounds)."""
    def linear(k, fan_in, fan_out):
        k_w, k_b = jax.random.split(k)
        bound = 1.0 / jnp.sqrt(fan_in)
        # stored as (in, out)  ==  PyTorch weight.T
        w = jax.random.uniform(k_w, (fan_in, fan_out), jnp.float32, -bound, bound)
        b = jax.random.uniform(k_b, (1, fan_out), jnp.float32, -bound, bound)
        return w, b

    k1, k2, k3 = jax.random.split(key, 3)
    w1, b1 = linear(k1, input_dim, hidden_dim)
    wmu, bmu = linear(k2, hidden_dim, latent_dim)
    wsg, bsg = linear(k3, hidden_dim, latent_dim)
    return {"w1": w1, "b1": b1, "wmu": wmu, "bmu": bmu,
            "wsigma": wsg, "bsigma": bsg}


def encoder_ref_f32(x, p):
    """Pure-f32 JAX reference matching the PyTorch forward semantics."""
    h = jnp.maximum(x @ p["w1"] + p["b1"], 0.0)
    return h @ p["wmu"] + p["bmu"], h @ p["wsigma"] + p["bsigma"]


def encoder_ref_bf16path(x, p):
    """Reference mirroring the kernel's numeric path (bf16 inputs, f32 acc)."""
    f32 = jnp.float32
    xb = x.astype(jnp.bfloat16).astype(f32)
    w1 = p["w1"].astype(jnp.bfloat16).astype(f32)
    h = jnp.maximum(xb @ w1 + p["b1"], 0.0)
    hb = h.astype(jnp.bfloat16).astype(f32)
    wmu = p["wmu"].astype(jnp.bfloat16).astype(f32)
    wsg = p["wsigma"].astype(jnp.bfloat16).astype(f32)
    return hb @ wmu + p["bmu"], hb @ wsg + p["bsigma"]


if __name__ == "__main__":
    input_dim, hidden_dim, latent_dim = 64, 32, 16
    batch = 8

    key = jax.random.PRNGKey(0)
    k_params, k_x = jax.random.split(key)

    params = init_encoder_params(k_params, input_dim, hidden_dim, latent_dim)
    x = jax.random.normal(k_x, (batch, input_dim), jnp.float32)

    mu, logsigma = encoder_forward(x, params)
    jax.block_until_ready((mu, logsigma))

    assert mu.shape == (batch, latent_dim)
    assert logsigma.shape == (batch, latent_dim)

    # Tight check against a reference that mirrors the kernel's bf16/f32 path.
    mu_rb, ls_rb = encoder_ref_bf16path(x, params)
    assert jnp.allclose(mu, mu_rb, atol=1e-3, rtol=1e-3)
    assert jnp.allclose(logsigma, ls_rb, atol=1e-3, rtol=1e-3)

    # Looser semantic check against the pure-f32 PyTorch-equivalent forward.
    mu_rf, ls_rf = encoder_ref_f32(x, params)
    assert jnp.allclose(mu, mu_rf, atol=5e-2, rtol=5e-2)
    assert jnp.allclose(logsigma, ls_rf, atol=5e-2, rtol=5e-2)

    print("KERNEL_OK")
</pallas_src>

<mosaic_0001>
module attributes {stable_mosaic.version = 11 : i64} {
  func.func @_encoder_kernel(%arg0: i32, %arg1: memref<16x64xbf16, #tpu.memory_space<vmem>>, %arg2: memref<64x32xbf16, #tpu.memory_space<vmem>>, %arg3: memref<1x32xf32, #tpu.memory_space<vmem>>, %arg4: memref<32x128xbf16, #tpu.memory_space<vmem>>, %arg5: memref<1x128xf32, #tpu.memory_space<vmem>>, %arg6: memref<16x128xf32, #tpu.memory_space<vmem>>) attributes {dimension_semantics = [#tpu.dimension_semantics<parallel>], iteration_bounds = array<i64: 1>, scalar_prefetch = 0 : i64, scratch_operands = 0 : i64, tpu.core_type = #tpu.core_type<tc>, window_params = [{transform_indices = @transform_0, window_bounds = array<i64: 16, 64>}, {pipeline_mode = #tpu.pipeline_mode<synchronous>, transform_indices = @transform_1, window_bounds = array<i64: 64, 32>}, {pipeline_mode = #tpu.pipeline_mode<synchronous>, transform_indices = @transform_2, window_bounds = array<i64: 1, 32>}, {pipeline_mode = #tpu.pipeline_mode<synchronous>, transform_indices = @transform_3, window_bounds = array<i64: 32, 128>}, {pipeline_mode = #tpu.pipeline_mode<synchronous>, transform_indices = @transform_4, window_bounds = array<i64: 1, 128>}, {transform_indices = @transform_5, window_bounds = array<i64: 16, 128>}]} {
    %c0 = arith.constant 0 : index
    %c0_0 = arith.constant 0 : index
    %0 = vector.load %arg1[%c0, %c0_0] : memref<16x64xbf16, #tpu.memory_space<vmem>>, vector<16x64xbf16>
    %c0_1 = arith.constant 0 : index
    %c0_2 = arith.constant 0 : index
    %1 = vector.load %arg2[%c0_1, %c0_2] : memref<64x32xbf16, #tpu.memory_space<vmem>>, vector<64x32xbf16>
    %cst = arith.constant dense<0.000000e+00> : vector<16x32xf32>
    %2 = tpu.matmul %0, %1, %cst {dimension_numbers = #tpu.dot_dimension_numbers<[1], [0], [0], [1], [0, 0, 1, 1], [], []>} : vector<16x64xbf16>, vector<64x32xbf16>, vector<16x32xf32> -> vector<16x32xf32>
    %c0_3 = arith.constant 0 : index
    %c0_4 = arith.constant 0 : index
    %3 = vector.load %arg3[%c0_3, %c0_4] : memref<1x32xf32, #tpu.memory_space<vmem>>, vector<1x32xf32>
    %4 = vector.broadcast %3 : vector<1x32xf32> to vector<16x32xf32>
    %5 = arith.addf %2, %4 : vector<16x32xf32>
    %cst_5 = arith.constant 0.000000e+00 : f32
    %6 = vector.broadcast %cst_5 : f32 to vector<16x32xf32>
    %7 = arith.maximumf %5, %6 : vector<16x32xf32>
    %8 = arith.truncf %7 : vector<16x32xf32> to vector<16x32xbf16>
    %c0_6 = arith.constant 0 : index
    %c0_7 = arith.constant 0 : index
    %9 = vector.load %arg4[%c0_6, %c0_7] : memref<32x128xbf16, #tpu.memory_space<vmem>>, vector<32x128xbf16>
    %cst_8 = arith.constant dense<0.000000e+00> : vector<16x128xf32>
    %10 = tpu.matmul %8, %9, %cst_8 {dimension_numbers = #tpu.dot_dimension_numbers<[1], [0], [0], [1], [0, 0, 1, 1], [], []>} : vector<16x32xbf16>, vector<32x128xbf16>, vector<16x128xf32> -> vector<16x128xf32>
    %c0_9 = arith.constant 0 : index
    %c0_10 = arith.constant 0 : index
    %11 = vector.load %arg5[%c0_9, %c0_10] : memref<1x128xf32, #tpu.memory_space<vmem>>, vector<1x128xf32>
    %12 = vector.broadcast %11 : vector<1x128xf32> to vector<16x128xf32>
    %13 = arith.addf %10, %12 : vector<16x128xf32>
    %c0_11 = arith.constant 0 : index
    %c0_12 = arith.constant 0 : index
    %14 = vector.load %arg6[%c0_11, %c0_12] : memref<16x128xf32, #tpu.memory_space<vmem>>, vector<16x128xf32>
    tpu.vector_store %arg6[%c0_11, %c0_12], %13 {strides = array<i32>} : memref<16x128xf32, #tpu.memory_space<vmem>>, vector<16x128xf32>,
    return
  }
  func.func @transform_0(%arg0: i32) -> (i32, i32) {
    %c0_i32 = arith.constant 0 : i32
    %c0_i32_0 = arith.constant 0 : i32
    return %arg0, %c0_i32 : i32, i32
  }
  func.func @transform_1(%arg0: i32) -> (i32, i32) {
    %c0_i32 = arith.constant 0 : i32
    %c0_i32_0 = arith.constant 0 : i32
    %c0_i32_1 = arith.constant 0 : i32
    return %c0_i32, %c0_i32_0 : i32, i32
  }
  func.func @transform_2(%arg0: i32) -> (i32, i32) {
    %c0_i32 = arith.constant 0 : i32
    %c0_i32_0 = arith.constant 0 : i32
    %c0_i32_1 = arith.constant 0 : i32
    return %c0_i32, %c0_i32_0 : i32, i32
  }
  func.func @transform_3(%arg0: i32) -> (i32, i32) {
    %c0_i32 = arith.constant 0 : i32
    %c0_i32_0 = arith.constant 0 : i32
    %c0_i32_1 = arith.constant 0 : i32
    return %c0_i32, %c0_i32_0 : i32, i32
  }
  func.func @transform_4(%arg0: i32) -> (i32, i32) {
    %c0_i32 = arith.constant 0 : i32
    %c0_i32_0 = arith.constant 0 : i32
    %c0_i32_1 = arith.constant 0 : i32
    return %c0_i32, %c0_i32_0 : i32, i32
  }
  func.func @transform_5(%arg0: i32) -> (i32, i32) {
    %c0_i32 = arith.constant 0 : i32
    %c0_i32_0 = arith.constant 0 : i32
    return %arg0, %c0_i32 : i32, i32
  }
}

</mosaic_0001>

<llo_original>
// kernel: tpu_custom_call.1
$region0: #{tpu_custom_call.1}
  #allocation0 [shape = 'u32[]', space=smem, size = 0x4, offset = 0x4, fixed_abs, tag = 'smem constant byte address 0x4 - core index']
  #allocation1 [shape = 'u32[72,128]{1,0:T(1,128)}', space=vmem, size = 0x9000, scoped, tag = 'internal scratch']
  %s0 = inlined_call_operand.vmem [shape: bf16[16,64], index: 0, kind: input, shape index: {}]
  %s1 = inlined_call_operand.vmem [shape: bf16[64,32], index: 1, kind: input, shape index: {}]
  %s2 = inlined_call_operand.vmem [shape: f32[1,32], index: 2, kind: input, shape index: {}]
  %s3 = inlined_call_operand.vmem [shape: bf16[32,128], index: 3, kind: input, shape index: {}]
  %s4 = inlined_call_operand.vmem [shape: f32[1,128], index: 4, kind: input, shape index: {}]
  %s5 = inlined_call_operand.hbm [shape: f32[16,128], index: 5, kind: output, shape index: {}]
  %s6 = sld [smem:[#allocation0]]
  $region30: #{tpu_custom_call.1} parent=0
    _
  %s8 = ssub.s32 1, %s6
  %s9 = scalar_select 0, %s8, %s6
  $region1: #{tpu_custom_call.1} parent=0
    #allocation2 [shape = 'u8[8192]{0}', space=vmem, size = 0x2000, scoped, tag = 'output window, operand 0, single buffered']
    #allocation3 [shape = 's32[1]{0}', space=sflag, size = 0x4, scoped, tag = 'scoped memory for tpu_custom_call.1']
    %10 = vsyncpa [#allocation3], 0
    // Predicated region
    $region2: #{tpu_custom_call.1} parent=1 // pred_check
      _
    $region3: #{tpu_custom_call.1} parent=1 // pred_check_branch
      %12 = sbr.rel (0) target = $region5
    $region4: #{tpu_custom_call.1} parent=1 // pred_region
      _
    $region5: #{tpu_custom_call.1} parent=1 // pred_fallthru
      _
    // Predicated region
    $region6: #{tpu_custom_call.1} parent=1 // pred_check
      _
    $region7: #{tpu_custom_call.1} parent=1 // pred_check_branch
      %14 = sbr.rel (0) target = $region9
    $region8: #{tpu_custom_call.1} parent=1 // pred_region
      _
    $region9: #{tpu_custom_call.1} parent=1 // pred_fallthru
      _
    // Predicated region
    $region10: #{tpu_custom_call.1} parent=1 // pred_check
      _
    $region11: #{tpu_custom_call.1} parent=1 // pred_check_branch
      %16 = sbr.rel (0) target = $region13
    $region12: #{tpu_custom_call.1} parent=1 // pred_region
      _
    $region13: #{tpu_custom_call.1} parent=1 // pred_fallthru
      _
    // Predicated region
    $region14: #{tpu_custom_call.1} parent=1 // pred_check
      _
    $region15: #{tpu_custom_call.1} parent=1 // pred_check_branch
      %18 = sbr.rel (0) target = $region17
    $region16: #{tpu_custom_call.1} parent=1 // pred_region
      _
    $region17: #{tpu_custom_call.1} parent=1 // pred_fallthru
      _
    // Predicated region
    $region18: #{tpu_custom_call.1} parent=1 // pred_check
      _
    $region19: #{tpu_custom_call.1} parent=1 // pred_check_branch
      %20 = sbr.rel (0) target = $region21
    $region20: #{tpu_custom_call.1} parent=1 // pred_region
      _
    $region21: #{tpu_custom_call.1} parent=1 // pred_fallthru
      _
    %v22 = vld [vmem:[%s0] sm:$0xf]
    %v23 = vld [vmem:[%s0 + $0x4] sm:$0xf]
    %v24 = vld [vmem:[%s1] sm:$0xf]
    %v25 = vld [vmem:[%s1 + $0x4] sm:$0xf]
    %v26 = vld [vmem:[%s1 + $0x8] sm:$0xf]
    %v27 = vld [vmem:[%s1 + $0xc] sm:$0xf]
    %v28 = vld [vmem:[%s1 + $0x10] sm:$0xf]
    %v29 = vld [vmem:[%s1 + $0x14] sm:$0xf]
    %v30 = vld [vmem:[%s1 + $0x18] sm:$0xf]
    %v31 = vld [vmem:[%s1 + $0x1c] sm:$0xf]
    %v32 = vld [vmem:[%s2] sm:$0x1]
    %v34 = vperm.slane %v32, 0
    %v38 = vunpack.c.l.b16 %v22
    %v39 = vunpack.c.l.b16 %v23
    %v40 = vpack.c.b16 %v39, %v38
    %v49 = vunpack.c.l.b16 %v24
    %v50 = vunpack.c.l.b16 %v25
    %v51 = vunpack.c.l.b16 %v26
    %v52 = vunpack.c.l.b16 %v27
    %v53 = vunpack.c.l.b16 %v28
    %v54 = vunpack.c.l.b16 %v29
    %v55 = vunpack.c.l.b16 %v30
    %v56 = vunpack.c.l.b16 %v31
    %v57 = vpack.c.b16 %v50, %v49
    %v58 = vpack.c.b16 %v52, %v51
    %v59 = vpack.c.b16 %v54, %v53
    %v60 = vpack.c.b16 %v56, %v55
    %vm65 = vcmask 523264
    %v67 = vsel %vm65, %v40, 0
    %69 = vmatpush.bf16.msra.mxu0 0
    %70 = vmatpush.bf16.msra.mxu0 0
    %71 = vmatpush.bf16.msra.mxu0 0
    %72 = vmatpush.bf16.msra.mxu0 0
    %73 = vmatpush.bf16.msra.mxu0 %v60
    %74 = vmatpush.bf16.msra.mxu0 %v59
    %75 = vmatpush.bf16.msra.mxu0 %v58
    %76 = vmatpush.bf16.msra.mxu0 %v57
    %77 = vmatmul.bf16.gmra.mxu0 %v67
    %v78 = vpop.f32.mrf.mxu0
    %v79 = vadd.f32 %v34, %v78
    %v80 = vpop.f32.mrf.mxu0
    %v81 = vadd.f32 %v34, %v80
    %82 = vdwg.mxu0
    %v83 = vmax.f32 %v79, 0.0
    %v84 = vmax.f32 %v81, 0.0
    %v85 = vpack.c.bf16 %v84, %v83
    %v86 = vld [vmem:[%s3] sm:$0xf]
    %v87 = vld [vmem:[%s3 + $0x4] sm:$0xf]
    %v88 = vld [vmem:[%s3 + $0x8] sm:$0xf]
    %v89 = vld [vmem:[%s3 + $0xc] sm:$0xf]
    %v90 = vld [vmem:[%s4] sm:$0x1]
    %v92 = vperm.slane %v90, 0
    %v98 = vunpack.c.l.b16 %v86
    %v99 = vunpack.c.l.b16 %v87
    %v100 = vunpack.c.l.b16 %v88
    %v101 = vunpack.c.l.b16 %v89
    %v102 = vpack.c.b16 %v99, %v98
    %v103 = vpack.c.b16 %v101, %v100
    %vm106 = vcmask 261120
    %v108 = vsel %vm106, %v85, 0
    %110 = vmatpush.bf16.msra.mxu0 0
    %111 = vmatpush.bf16.msra.mxu0 0
    %112 = vmatpush.bf16.msra.mxu0 0
    %113 = vmatpush.bf16.msra.mxu0 0
    %114 = vmatpush.bf16.msra.mxu0 0
    %115 = vmatpush.bf16.msra.mxu0 0
    %116 = vmatpush.bf16.msra.mxu0 %v103
    %117 = vmatpush.bf16.msra.mxu0 %v102
    %118 = vmatmul.bf16.gmra.mxu0 %v108
    %v119 = vpop.f32.mrf.mxu0
    %v120 = vadd.f32 %v92, %v119
    %v121 = vpop.f32.mrf.mxu0
    %v122 = vadd.f32 %v92, %v121
    %123 = vdwg.mxu0
    %124 = vst [vmem:[#allocation2] sm:$0xff] %v120
    %125 = vst [vmem:[#allocation2 + $0x8] sm:$0xff] %v122
    // Predicated region
    $region22: #{tpu_custom_call.1} parent=1 // pred_check
      _
    $region23: #{tpu_custom_call.1} parent=1 // pred_check_branch
      %127 = sbr.rel (0) target = $region25
    $region24: #{tpu_custom_call.1} parent=1 // pred_region
      %129 = vsyncadd [#allocation3], 0
      %s130 = sshll.u32 [#allocation2], 4
      %s131 = int_to_ptr.vmem [resolvable:$true] %s130
      %s132 = sshll.u32 %s5, 4
      %s133 = int_to_ptr.hbm [resolvable:$true] %s132
      %138 = dma.vmem_to_hbm [thread:$0]  %s131, 256, %s133, [#allocation3], 128, 128, 8
    $region25: #{tpu_custom_call.1} parent=1 // pred_fallthru
      _
    // Predicated region
    $region26: #{tpu_custom_call.1} parent=1 // pred_check
      _
    $region27: #{tpu_custom_call.1} parent=1 // pred_check_branch
      %140 = sbr.rel (0) target = $region29
    $region28: #{tpu_custom_call.1} parent=1 // pred_region
      %142 = dma.done [#allocation3], 256
    $region29: #{tpu_custom_call.1} parent=1 // pred_fallthru
      _
    %143 = vsyncpa [#allocation3], 1

</llo_original>
